<compile_context>
chip_gen: v7x
topology: tpu7x:2x2x1
jax: 0.10.0
libtpu: 0.0.40
codegen_flags: <defaults>
</compile_context>

<pallas_src>
import jax
import jax.numpy as jnp
from jax.experimental import pallas as pl
from jax.experimental.pallas import tpu as pltpu


def additive_attention_kernel(q_ref, k_ref, v_ref, mask_ref,
                              wq_ref, wk_ref, wv_ref, out_ref,
                              qp_s, m_s, l_s, acc_s):
    TB, Q, Dq = q_ref.shape
    _, TK, Dk = k_ref.shape
    Dv = v_ref.shape[2]
    H = wq_ref.shape[1]
    kv = pl.program_id(1)

    @pl.when(kv == 0)
    def _init():
        # Query projection is invariant along the key-tile axis: compute it once
        # per batch tile as a single fused (TB*Q, Dq) MXU matmul and keep it
        # resident in VMEM scratch.  (Q % 8 == 0 keeps these reshapes free.)
        qp_s[...] = jnp.dot(q_ref[...].reshape(TB * Q, Dq), wq_ref[...],
                            preferred_element_type=jnp.float32).reshape(TB, Q, H)
        m_s[...] = jnp.full_like(m_s, -jnp.inf)
        l_s[...] = jnp.zeros_like(l_s)
        acc_s[...] = jnp.zeros_like(acc_s)

    # Key projection for this key tile: one fused (TB*TK, Dk) @ (Dk, H) matmul.
    kp = jnp.dot(k_ref[...].reshape(TB * TK, Dk), wk_ref[...],
                 preferred_element_type=jnp.float32).reshape(TB, TK, H)

    # features = tanh(qp[:,:,None,:] + kp[:,None,:,:])  -> (TB, Q, TK, H)
    # Only the current key tile is materialized (online softmax below).
    feats = jnp.tanh(qp_s[...][:, :, None, :] + kp[:, None, :, :])

    # scores[b,q,k] = sum_h feats * w_v[h]  (VPU mul + XLU lane reduce over H;
    # the N=1 MXU contraction would waste 127/128 MXU columns at small H).
    scores = jnp.sum(feats * wv_ref[...], axis=-1)              # (TB, Q, TK)

    # Exact masked fill (matches masked_softmax's -1e6 replacement, including
    # the uniform-attention behavior when a row is fully masked).
    scores = jnp.where(mask_ref[...][:, None, :] > 0.5, scores,
                       jnp.float32(-1000000.0))

    # Online (flash-style) softmax carried across key tiles in VMEM scratch.
    m_new = jnp.maximum(m_s[...], jnp.max(scores, axis=-1, keepdims=True))
    alpha = jnp.exp(m_s[...] - m_new)
    p = jnp.exp(scores - m_new)
    l_s[...] = alpha * l_s[...] + jnp.sum(p, axis=-1, keepdims=True)
    acc_s[...] = alpha * acc_s[...] + jnp.einsum(
        'bqk,bkd->bqd', p, v_ref[...], preferred_element_type=jnp.float32)
    m_s[...] = m_new

    @pl.when(kv == pl.num_programs(1) - 1)
    def _finalize():
        # EUP approx reciprocal + one Newton step (cheap, ~f32-exact).
        l = l_s[...]
        r = pl.reciprocal(l, approx=True)
        r = r * (2.0 - l * r)
        out = acc_s[...] * r                                    # (TB, Q, Dv)
        # Lane-dense store: flattened (TB, Q*Dv) slab avoids masked partial
        # stores when Dv < 128 (Q*Dv = 128 at these shapes).
        out_ref[...] = out.reshape(TB, Q * Dv).astype(out_ref.dtype)


def _pick_k_tile(K, Q, H, budget_bytes, tb_hint=8):
    """Key-axis tile: full K when small, otherwise the largest 128-aligned
    divisor whose per-step feature tile fits the working-set budget."""
    if K <= 512:
        return K
    for tk in (512, 384, 256, 128):
        if K % tk == 0 and 3 * tb_hint * Q * tk * H * 4 <= budget_bytes:
            return tk
    return K  # no aligned divisor: fall back to a single key tile


def _pick_batch_tile(B, Q, TK, H, Dv, budget_bytes, target_rows=256):
    """Batch tile: a divisor of B that (a) keeps the flattened (TB, Q*Dv)
    output / (TB, TK) mask blocks sublane-legal (TB % 8 == 0 or TB == B),
    (b) fits the per-step working set (3x feats + scratch) in the budget, and
    (c) when possible leaves >= 2 batch grid steps for v7x's two TensorCores."""
    def fits(tb):
        feats_live = 3 * tb * Q * TK * H * 4   # tanh out, *w_v product, exp co-live
        scratch = tb * Q * (H + Dv + 2) * 4
        return feats_live + scratch <= budget_bytes

    legal = [d for d in range(1, B + 1)
             if B % d == 0 and (d % 8 == 0 or d == B)]
    fitting = [d for d in legal if fits(d)] or [min(legal)]
    multi = [d for d in fitting if B // d >= 2]
    pool = multi if multi else fitting
    enough = [d for d in pool if d * Q >= target_rows]
    return min(enough) if enough else max(pool)


def _vmem_bytes(TB, Q, TK, H, Dq, Dk, Dv):
    """Rough per-step VMEM working set: 3x feats tile (tanh output, *w_v product,
    exp/scores co-live) + double-buffered I/O blocks + weights + scratch."""
    f32 = 4
    feats_live = 3 * TB * Q * TK * H * f32
    io = 2 * f32 * (TB * Q * Dq + TB * TK * (Dk + Dv + 1) + TB * Q * Dv)
    weights = 2 * f32 * (Dq * H + Dk * H + H)
    scratch = f32 * TB * Q * (H + Dv + 2)
    return feats_live + io + weights + scratch


def additive_attention(queries, keys, values, valid_lens, W_q, W_k, W_v):
    """queries (B,Q,Dq), keys (B,K,Dk), values (B,K,Dv), valid_lens (B,) int or None.
    W_q (Dq,H), W_k (Dk,H), W_v (1,H).  Returns (B,Q,Dv) float32."""
    B, Q, Dq = queries.shape
    _, K, Dk = keys.shape
    _, _, Dv = values.shape
    H = W_q.shape[1]

    # Per-generation VMEM capacity (v5e/v6e 128 MiB, v7x 64 MiB); budget a
    # fraction of it for the per-step working set.
    try:
        vmem_cap = int(pltpu.get_tpu_info().vmem_capacity_bytes)
    except Exception:
        vmem_cap = 64 << 20
    budget = vmem_cap // 3

    TK = _pick_k_tile(K, Q, H, budget)
    TB = _pick_batch_tile(B, Q, TK, H, Dv, budget)

    est = _vmem_bytes(TB, Q, TK, H, Dq, Dk, Dv)
    vmem_limit = int(min(vmem_cap * 7 // 8,
                         max(est * 5 // 4 + (4 << 20), 16 << 20)))

    # Precompute the key-validity mask wrapper-side: lane-aligned (B, K) f32,
    # 1.0 = keep, 0.0 = masked (exact -1e6 replacement in-kernel).
    # TODO(synk): 2-D (per-query) valid_lens would need a (B, Q, K) mask.
    if valid_lens is None:
        mask = jnp.ones((B, K), jnp.float32)
    else:
        kidx = jnp.arange(K, dtype=jnp.int32)[None, :]
        mask = (kidx < valid_lens.astype(jnp.int32).reshape(B, 1)).astype(jnp.float32)

    out_flat = pl.pallas_call(
        additive_attention_kernel,
        out_shape=jax.ShapeDtypeStruct((B, Q * Dv), jnp.float32),
        grid=(B // TB, K // TK),
        in_specs=[
            pl.BlockSpec((TB, Q, Dq), lambda b, kv: (b, 0, 0)),
            pl.BlockSpec((TB, TK, Dk), lambda b, kv: (b, kv, 0)),
            pl.BlockSpec((TB, TK, Dv), lambda b, kv: (b, kv, 0)),
            pl.BlockSpec((TB, TK), lambda b, kv: (b, kv)),
            pl.BlockSpec((Dq, H), lambda b, kv: (0, 0)),
            pl.BlockSpec((Dk, H), lambda b, kv: (0, 0)),
            pl.BlockSpec((1, H), lambda b, kv: (0, 0)),
        ],
        out_specs=pl.BlockSpec((TB, Q * Dv), lambda b, kv: (b, 0)),
        scratch_shapes=[
            pltpu.VMEM((TB, Q, H), jnp.float32),    # qp (query projection)
            pltpu.VMEM((TB, Q, 1), jnp.float32),    # m (running max)
            pltpu.VMEM((TB, Q, 1), jnp.float32),    # l (running denom)
            pltpu.VMEM((TB, Q, Dv), jnp.float32),   # acc (running numerator)
        ],
        compiler_params=pltpu.CompilerParams(
            dimension_semantics=("parallel", "arbitrary"),
            vmem_limit_bytes=vmem_limit),
    )(queries, keys, values, mask, W_q, W_k, W_v)

    return out_flat.reshape(B, Q, Dv)


def additive_attention_ref(queries, keys, values, valid_lens, W_q, W_k, W_v):
    """Pure-JAX reference mirroring the PyTorch forward."""
    qp = queries @ W_q                                          # (B,Q,H)
    kp = keys @ W_k                                             # (B,K,H)
    feats = jnp.tanh(qp[:, :, None, :] + kp[:, None, :, :])     # (B,Q,K,H)
    scores = jnp.sum(feats * W_v[None, None, :, :], axis=-1)    # (B,Q,K)
    if valid_lens is not None:
        kidx = jnp.arange(scores.shape[-1])[None, None, :]
        m = kidx < valid_lens[:, None, None]
        scores = jnp.where(m, scores, -1000000.0)
    attn = jax.nn.softmax(scores, axis=-1)
    return jnp.einsum('bqk,bkd->bqd', attn, values)


if __name__ == "__main__":
    # Small shapes consistent with the module's forward.
    B, Q, K = 2, 8, 8
    query_size, key_size, num_hiddens, value_dim = 16, 8, 32, 16

    key = jax.random.PRNGKey(0)
    kq, kk, kv, kwq, kwk, kwv = jax.random.split(key, 6)

    queries = jax.random.normal(kq, (B, Q, query_size), dtype=jnp.float32)
    keys = jax.random.normal(kk, (B, K, key_size), dtype=jnp.float32)
    values = jax.random.normal(kv, (B, K, value_dim), dtype=jnp.float32)
    valid_lens = jnp.array([3, 6], dtype=jnp.int32)

    # Deterministic parameter init (nn.Linear-style uniform, bias-free), stored
    # transposed relative to PyTorch: (in_features, out_features).
    def linear_init(k, fan_in, shape):
        bound = 1.0 / (fan_in ** 0.5)
        return jax.random.uniform(k, shape, jnp.float32, -bound, bound)

    W_q = linear_init(kwq, query_size, (query_size, num_hiddens))
    W_k = linear_init(kwk, key_size, (key_size, num_hiddens))
    W_v = linear_init(kwv, num_hiddens, (1, num_hiddens))   # nn.Linear(num_hiddens, 1)

    out = additive_attention(queries, keys, values, valid_lens, W_q, W_k, W_v)
    out = jax.block_until_ready(out)

    ref = additive_attention_ref(queries, keys, values, valid_lens, W_q, W_k, W_v)
    assert out.shape == (B, Q, value_dim)
    assert jnp.allclose(out, ref, atol=1e-4, rtol=1e-4), "mismatch vs pure-JAX reference"

    print("KERNEL_OK")
</pallas_src>

<mosaic_0001>
module attributes {stable_mosaic.version = 11 : i64} {
  func.func @additive_attention_kernel(%arg0: i32, %arg1: i32, %arg2: memref<2x8x16xf32, #tpu.memory_space<vmem>>, %arg3: memref<2x8x8xf32, #tpu.memory_space<vmem>>, %arg4: memref<2x8x16xf32, #tpu.memory_space<vmem>>, %arg5: memref<2x8xf32, #tpu.memory_space<vmem>>, %arg6: memref<16x32xf32, #tpu.memory_space<vmem>>, %arg7: memref<8x32xf32, #tpu.memory_space<vmem>>, %arg8: memref<1x32xf32, #tpu.memory_space<vmem>>, %arg9: memref<2x128xf32, #tpu.memory_space<vmem>>, %arg10: memref<2x8x32xf32, #tpu.memory_space<vmem>>, %arg11: memref<2x8x1xf32, #tpu.memory_space<vmem>>, %arg12: memref<2x8x1xf32, #tpu.memory_space<vmem>>, %arg13: memref<2x8x16xf32, #tpu.memory_space<vmem>>) attributes {dimension_semantics = [#tpu.dimension_semantics<parallel>, #tpu.dimension_semantics<arbitrary>], iteration_bounds = array<i64: 1, 1>, scalar_prefetch = 0 : i64, scratch_operands = 4 : i64, tpu.core_type = #tpu.core_type<tc>, window_params = [{transform_indices = @transform_0, window_bounds = array<i64: 2, 8, 16>}, {transform_indices = @transform_1, window_bounds = array<i64: 2, 8, 8>}, {transform_indices = @transform_2, window_bounds = array<i64: 2, 8, 16>}, {transform_indices = @transform_3, window_bounds = array<i64: 2, 8>}, {pipeline_mode = #tpu.pipeline_mode<synchronous>, transform_indices = @transform_4, window_bounds = array<i64: 16, 32>}, {pipeline_mode = #tpu.pipeline_mode<synchronous>, transform_indices = @transform_5, window_bounds = array<i64: 8, 32>}, {pipeline_mode = #tpu.pipeline_mode<synchronous>, transform_indices = @transform_6, window_bounds = array<i64: 1, 32>}, {transform_indices = @transform_7, window_bounds = array<i64: 2, 128>}]} {
    %c0_i32 = arith.constant 0 : i32
    %0 = arith.cmpi eq, %arg1, %c0_i32 : i32
    %1 = arith.extui %0 : i1 to i32
    %c0_i32_0 = arith.constant 0 : i32
    %2 = arith.cmpi ne, %1, %c0_i32_0 : i32
    scf.if %2 {
      %c0_44 = arith.constant 0 : index
      %c0_45 = arith.constant 0 : index
      %c0_46 = arith.constant 0 : index
      %55 = vector.load %arg2[%c0_44, %c0_45, %c0_46] : memref<2x8x16xf32, #tpu.memory_space<vmem>>, vector<2x8x16xf32>
      %56 = vector.shape_cast %55 : vector<2x8x16xf32> to vector<16x16xf32>
      %c0_47 = arith.constant 0 : index
      %c0_48 = arith.constant 0 : index
      %57 = vector.load %arg6[%c0_47, %c0_48] : memref<16x32xf32, #tpu.memory_space<vmem>>, vector<16x32xf32>
      %cst_49 = arith.constant dense<0.000000e+00> : vector<16x32xf32>
      %58 = tpu.matmul %56, %57, %cst_49 {dimension_numbers = #tpu.dot_dimension_numbers<[1], [0], [0], [1], [0, 0, 1, 1], [], []>} : vector<16x16xf32>, vector<16x32xf32>, vector<16x32xf32> -> vector<16x32xf32>
      %59 = vector.shape_cast %58 : vector<16x32xf32> to vector<2x8x32xf32>
      %c0_50 = arith.constant 0 : index
      %c0_51 = arith.constant 0 : index
      %c0_52 = arith.constant 0 : index
      %60 = vector.load %arg10[%c0_50, %c0_51, %c0_52] : memref<2x8x32xf32, #tpu.memory_space<vmem>>, vector<2x8x32xf32>
      tpu.vector_store %arg10[%c0_50, %c0_51, %c0_52], %59 {strides = array<i32>} : memref<2x8x32xf32, #tpu.memory_space<vmem>>, vector<2x8x32xf32>,
      %cst_53 = arith.constant 0xFF800000 : f32
      %61 = vector.broadcast %cst_53 : f32 to vector<2x8x1xf32>
      %c0_54 = arith.constant 0 : index
      %c0_55 = arith.constant 0 : index
      %c0_56 = arith.constant 0 : index
      %62 = vector.load %arg11[%c0_54, %c0_55, %c0_56] : memref<2x8x1xf32, #tpu.memory_space<vmem>>, vector<2x8x1xf32>
      tpu.vector_store %arg11[%c0_54, %c0_55, %c0_56], %61 {strides = array<i32>} : memref<2x8x1xf32, #tpu.memory_space<vmem>>, vector<2x8x1xf32>,
      %cst_57 = arith.constant 0.000000e+00 : f32
      %63 = vector.broadcast %cst_57 : f32 to vector<2x8x1xf32>
      %c0_58 = arith.constant 0 : index
      %c0_59 = arith.constant 0 : index
      %c0_60 = arith.constant 0 : index
      %64 = vector.load %arg12[%c0_58, %c0_59, %c0_60] : memref<2x8x1xf32, #tpu.memory_space<vmem>>, vector<2x8x1xf32>
      tpu.vector_store %arg12[%c0_58, %c0_59, %c0_60], %63 {strides = array<i32>} : memref<2x8x1xf32, #tpu.memory_space<vmem>>, vector<2x8x1xf32>,
      %cst_61 = arith.constant 0.000000e+00 : f32
      %65 = vector.broadcast %cst_61 : f32 to vector<2x8x16xf32>
      %c0_62 = arith.constant 0 : index
      %c0_63 = arith.constant 0 : index
      %c0_64 = arith.constant 0 : index
      %66 = vector.load %arg13[%c0_62, %c0_63, %c0_64] : memref<2x8x16xf32, #tpu.memory_space<vmem>>, vector<2x8x16xf32>
      tpu.vector_store %arg13[%c0_62, %c0_63, %c0_64], %65 {strides = array<i32>} : memref<2x8x16xf32, #tpu.memory_space<vmem>>, vector<2x8x16xf32>,
    } else {
    }
    %c0 = arith.constant 0 : index
    %c0_1 = arith.constant 0 : index
    %c0_2 = arith.constant 0 : index
    %3 = vector.load %arg3[%c0, %c0_1, %c0_2] : memref<2x8x8xf32, #tpu.memory_space<vmem>>, vector<2x8x8xf32>
    %4 = vector.shape_cast %3 : vector<2x8x8xf32> to vector<16x8xf32>
    %c0_3 = arith.constant 0 : index
    %c0_4 = arith.constant 0 : index
    %5 = vector.load %arg7[%c0_3, %c0_4] : memref<8x32xf32, #tpu.memory_space<vmem>>, vector<8x32xf32>
    %cst = arith.constant dense<0.000000e+00> : vector<16x32xf32>
    %6 = tpu.matmul %4, %5, %cst {dimension_numbers = #tpu.dot_dimension_numbers<[1], [0], [0], [1], [0, 0, 1, 1], [], []>} : vector<16x8xf32>, vector<8x32xf32>, vector<16x32xf32> -> vector<16x32xf32>
    %7 = vector.shape_cast %6 : vector<16x32xf32> to vector<2x8x32xf32>
    %c0_5 = arith.constant 0 : index
    %c0_6 = arith.constant 0 : index
    %c0_7 = arith.constant 0 : index
    %8 = vector.load %arg10[%c0_5, %c0_6, %c0_7] : memref<2x8x32xf32, #tpu.memory_space<vmem>>, vector<2x8x32xf32>
    %9 = vector.shape_cast %8 : vector<2x8x32xf32> to vector<2x8x1x32xf32>
    %10 = vector.shape_cast %7 : vector<2x8x32xf32> to vector<2x1x8x32xf32>
    %11 = vector.broadcast %9 : vector<2x8x1x32xf32> to vector<2x8x8x32xf32>
    %12 = vector.broadcast %10 : vector<2x1x8x32xf32> to vector<2x8x8x32xf32>
    %13 = arith.addf %11, %12 : vector<2x8x8x32xf32>
    %14 = math.tanh %13 : vector<2x8x8x32xf32>
    %c0_8 = arith.constant 0 : index
    %c0_9 = arith.constant 0 : index
    %15 = vector.load %arg8[%c0_8, %c0_9] : memref<1x32xf32, #tpu.memory_space<vmem>>, vector<1x32xf32>
    %16 = vector.shape_cast %15 : vector<1x32xf32> to vector<1x1x1x32xf32>
    %17 = vector.broadcast %16 : vector<1x1x1x32xf32> to vector<2x8x8x32xf32>
    %18 = arith.mulf %14, %17 : vector<2x8x8x32xf32>
    %cst_10 = arith.constant dense<0.000000e+00> : vector<2x8x8xf32>
    %19 = vector.multi_reduction <add>, %18, %cst_10 [3] : vector<2x8x8x32xf32> to vector<2x8x8xf32>
    %c0_11 = arith.constant 0 : index
    %c0_12 = arith.constant 0 : index
    %20 = vector.load %arg5[%c0_11, %c0_12] : memref<2x8xf32, #tpu.memory_space<vmem>>, vector<2x8xf32>
    %21 = vector.shape_cast %20 : vector<2x8xf32> to vector<2x1x8xf32>
    %cst_13 = arith.constant 5.000000e-01 : f32
    %22 = vector.broadcast %cst_13 : f32 to vector<2x1x8xf32>
    %23 = arith.cmpf ogt, %21, %22 : vector<2x1x8xf32>
    %cst_14 = arith.constant -1.000000e+06 : f32
    %24 = vector.shape_cast %23 : vector<2x1x8xi1> to vector<2x1x8xi1>
    %25 = vector.broadcast %24 : vector<2x1x8xi1> to vector<2x8x8xi1>
    %26 = vector.broadcast %cst_14 : f32 to vector<2x8x8xf32>
    %27 = arith.select %25, %19, %26 : vector<2x8x8xi1>, vector<2x8x8xf32>
    %c0_15 = arith.constant 0 : index
    %c0_16 = arith.constant 0 : index
    %c0_17 = arith.constant 0 : index
    %28 = vector.load %arg11[%c0_15, %c0_16, %c0_17] : memref<2x8x1xf32, #tpu.memory_space<vmem>>, vector<2x8x1xf32>
    %cst_18 = arith.constant dense<0xFF800000> : vector<2x8xf32>
    %29 = vector.multi_reduction <maximumf>, %27, %cst_18 [2] : vector<2x8x8xf32> to vector<2x8xf32>
    %30 = vector.shape_cast %29 : vector<2x8xf32> to vector<2x8x1xf32>
    %31 = arith.maximumf %28, %30 : vector<2x8x1xf32>
    %c0_19 = arith.constant 0 : index
    %c0_20 = arith.constant 0 : index
    %c0_21 = arith.constant 0 : index
    %32 = vector.load %arg11[%c0_19, %c0_20, %c0_21] : memref<2x8x1xf32, #tpu.memory_space<vmem>>, vector<2x8x1xf32>
    %33 = arith.subf %32, %31 : vector<2x8x1xf32>
    %34 = math.exp %33 : vector<2x8x1xf32>
    %35 = vector.broadcast %31 : vector<2x8x1xf32> to vector<2x8x8xf32>
    %36 = arith.subf %27, %35 : vector<2x8x8xf32>
    %37 = math.exp %36 : vector<2x8x8xf32>
    %c0_22 = arith.constant 0 : index
    %c0_23 = arith.constant 0 : index
    %c0_24 = arith.constant 0 : index
    %38 = vector.load %arg12[%c0_22, %c0_23, %c0_24] : memref<2x8x1xf32, #tpu.memory_space<vmem>>, vector<2x8x1xf32>
    %39 = arith.mulf %34, %38 : vector<2x8x1xf32>
    %cst_25 = arith.constant dense<0.000000e+00> : vector<2x8xf32>
    %40 = vector.multi_reduction <add>, %37, %cst_25 [2] : vector<2x8x8xf32> to vector<2x8xf32>
    %41 = vector.shape_cast %40 : vector<2x8xf32> to vector<2x8x1xf32>
    %42 = arith.addf %39, %41 : vector<2x8x1xf32>
    %c0_26 = arith.constant 0 : index
    %c0_27 = arith.constant 0 : index
    %c0_28 = arith.constant 0 : index
    %43 = vector.load %arg12[%c0_26, %c0_27, %c0_28] : memref<2x8x1xf32, #tpu.memory_space<vmem>>, vector<2x8x1xf32>
    tpu.vector_store %arg12[%c0_26, %c0_27, %c0_28], %42 {strides = array<i32>} : memref<2x8x1xf32, #tpu.memory_space<vmem>>, vector<2x8x1xf32>,
    %c0_29 = arith.constant 0 : index
    %c0_30 = arith.constant 0 : index
    %c0_31 = arith.constant 0 : index
    %44 = vector.load %arg13[%c0_29, %c0_30, %c0_31] : memref<2x8x16xf32, #tpu.memory_space<vmem>>, vector<2x8x16xf32>
    %45 = vector.broadcast %34 : vector<2x8x1xf32> to vector<2x8x16xf32>
    %46 = arith.mulf %45, %44 : vector<2x8x16xf32>
    %c0_32 = arith.constant 0 : index
    %c0_33 = arith.constant 0 : index
    %c0_34 = arith.constant 0 : index
    %47 = vector.load %arg4[%c0_32, %c0_33, %c0_34] : memref<2x8x16xf32, #tpu.memory_space<vmem>>, vector<2x8x16xf32>
    "tpu.trace_start"() <{level = 10 : i32, message = "bqk,bkd->bqd"}> : () -> ()
    %cst_35 = arith.constant dense<0.000000e+00> : vector<2x8x16xf32>
    %48 = tpu.matmul %37, %47, %cst_35 {dimension_numbers = #tpu.dot_dimension_numbers<[2], [1], [1], [2], [0, 0, 0, 1, 1, 2], [0], [0]>} : vector<2x8x8xf32>, vector<2x8x16xf32>, vector<2x8x16xf32> -> vector<2x8x16xf32>
    "tpu.trace_stop"() : () -> ()
    %49 = arith.addf %46, %48 : vector<2x8x16xf32>
    %c0_36 = arith.constant 0 : index
    %c0_37 = arith.constant 0 : index
    %c0_38 = arith.constant 0 : index
    %50 = vector.load %arg13[%c0_36, %c0_37, %c0_38] : memref<2x8x16xf32, #tpu.memory_space<vmem>>, vector<2x8x16xf32>
    tpu.vector_store %arg13[%c0_36, %c0_37, %c0_38], %49 {strides = array<i32>} : memref<2x8x16xf32, #tpu.memory_space<vmem>>, vector<2x8x16xf32>,
    %c0_39 = arith.constant 0 : index
    %c0_40 = arith.constant 0 : index
    %c0_41 = arith.constant 0 : index
    %51 = vector.load %arg11[%c0_39, %c0_40, %c0_41] : memref<2x8x1xf32, #tpu.memory_space<vmem>>, vector<2x8x1xf32>
    tpu.vector_store %arg11[%c0_39, %c0_40, %c0_41], %31 {strides = array<i32>} : memref<2x8x1xf32, #tpu.memory_space<vmem>>, vector<2x8x1xf32>,
    %c0_i32_42 = arith.constant 0 : i32
    %52 = arith.cmpi eq, %arg1, %c0_i32_42 : i32
    %53 = arith.extui %52 : i1 to i32
    %c0_i32_43 = arith.constant 0 : i32
    %54 = arith.cmpi ne, %53, %c0_i32_43 : i32
    scf.if %54 {
      %c0_44 = arith.constant 0 : index
      %c0_45 = arith.constant 0 : index
      %c0_46 = arith.constant 0 : index
      %55 = vector.load %arg12[%c0_44, %c0_45, %c0_46] : memref<2x8x1xf32, #tpu.memory_space<vmem>>, vector<2x8x1xf32>
      %56 = tpu.reciprocal %55 {approx = true} : vector<2x8x1xf32> -> vector<2x8x1xf32>
      %57 = arith.mulf %55, %56 : vector<2x8x1xf32>
      %cst_47 = arith.constant 2.000000e+00 : f32
      %58 = vector.broadcast %cst_47 : f32 to vector<2x8x1xf32>
      %59 = arith.subf %58, %57 : vector<2x8x1xf32>
      %60 = arith.mulf %56, %59 : vector<2x8x1xf32>
      %c0_48 = arith.constant 0 : index
      %c0_49 = arith.constant 0 : index
      %c0_50 = arith.constant 0 : index
      %61 = vector.load %arg13[%c0_48, %c0_49, %c0_50] : memref<2x8x16xf32, #tpu.memory_space<vmem>>, vector<2x8x16xf32>
      %62 = vector.broadcast %60 : vector<2x8x1xf32> to vector<2x8x16xf32>
      %63 = arith.mulf %61, %62 : vector<2x8x16xf32>
      %64 = vector.shape_cast %63 : vector<2x8x16xf32> to vector<2x128xf32>
      %c0_51 = arith.constant 0 : index
      %c0_52 = arith.constant 0 : index
      %65 = vector.load %arg9[%c0_51, %c0_52] : memref<2x128xf32, #tpu.memory_space<vmem>>, vector<2x128xf32>
      tpu.vector_store %arg9[%c0_51, %c0_52], %64 {strides = array<i32>} : memref<2x128xf32, #tpu.memory_space<vmem>>, vector<2x128xf32>,
    } else {
    }
    return
  }
  func.func @transform_0(%arg0: i32, %arg1: i32) -> (i32, i32, i32) {
    %c0_i32 = arith.constant 0 : i32
    %c0_i32_0 = arith.constant 0 : i32
    %c0_i32_1 = arith.constant 0 : i32
    return %arg0, %c0_i32, %c0_i32_0 : i32, i32, i32
  }
  func.func @transform_1(%arg0: i32, %arg1: i32) -> (i32, i32, i32) {
    %c0_i32 = arith.constant 0 : i32
    %c0_i32_0 = arith.constant 0 : i32
    return %arg0, %arg1, %c0_i32 : i32, i32, i32
  }
  func.func @transform_2(%arg0: i32, %arg1: i32) -> (i32, i32, i32) {
    %c0_i32 = arith.constant 0 : i32
    %c0_i32_0 = arith.constant 0 : i32
    return %arg0, %arg1, %c0_i32 : i32, i32, i32
  }
  func.func @transform_3(%arg0: i32, %arg1: i32) -> (i32, i32) {
    %c0_i32 = arith.constant 0 : i32
    return %arg0, %arg1 : i32, i32
  }
  func.func @transform_4(%arg0: i32, %arg1: i32) -> (i32, i32) {
    %c0_i32 = arith.constant 0 : i32
    %c0_i32_0 = arith.constant 0 : i32
    %c0_i32_1 = arith.constant 0 : i32
    return %c0_i32, %c0_i32_0 : i32, i32
  }
  func.func @transform_5(%arg0: i32, %arg1: i32) -> (i32, i32) {
    %c0_i32 = arith.constant 0 : i32
    %c0_i32_0 = arith.constant 0 : i32
    %c0_i32_1 = arith.constant 0 : i32
    return %c0_i32, %c0_i32_0 : i32, i32
  }
  func.func @transform_6(%arg0: i32, %arg1: i32) -> (i32, i32) {
    %c0_i32 = arith.constant 0 : i32
    %c0_i32_0 = arith.constant 0 : i32
    %c0_i32_1 = arith.constant 0 : i32
    return %c0_i32, %c0_i32_0 : i32, i32
  }
  func.func @transform_7(%arg0: i32, %arg1: i32) -> (i32, i32) {
    %c0_i32 = arith.constant 0 : i32
    %c0_i32_0 = arith.constant 0 : i32
    return %arg0, %c0_i32 : i32, i32
  }
}

</mosaic_0001>

<llo_original>
// kernel: tpu_custom_call.1
$region0: #{tpu_custom_call.1}
  #allocation0 [shape = 'u32[]', space=smem, size = 0x4, offset = 0x4, fixed_abs, tag = 'smem constant byte address 0x4 - core index']
  #allocation1 [shape = 'u32[144,128]{1,0:T(1,128)}', space=vmem, size = 0x12000, scoped, tag = 'internal scratch']
  #allocation2 [shape = 'f32[2,8,32]{2,1,0:T(8,128)}', space=vmem, size = 0x2000, scoped, tag = 'scratch operand']
  #allocation3 [shape = 'f32[2,8,1]{2,1,0:T(8,128)}', space=vmem, size = 0x2000, scoped, tag = 'scratch operand']
  #allocation4 [shape = 'f32[2,8,1]{2,1,0:T(8,128)}', space=vmem, size = 0x2000, scoped, tag = 'scratch operand']
  #allocation5 [shape = 'f32[2,8,16]{2,1,0:T(8,128)}', space=vmem, size = 0x2000, scoped, tag = 'scratch operand']
  %s0 = inlined_call_operand.hbm [shape: f32[2,8,16], index: 0, kind: input, shape index: {}]
  %s1 = inlined_call_operand.hbm [shape: f32[2,8,8], index: 1, kind: input, shape index: {}]
  %s2 = inlined_call_operand.hbm [shape: f32[2,8,16], index: 2, kind: input, shape index: {}]
  %s3 = inlined_call_operand.vmem [shape: f32[2,8], index: 3, kind: input, shape index: {}]
  %s4 = inlined_call_operand.hbm [shape: f32[16,32], index: 4, kind: input, shape index: {}]
  %s5 = inlined_call_operand.vmem [shape: f32[8,32], index: 5, kind: input, shape index: {}]
  %s6 = inlined_call_operand.vmem [shape: f32[1,32], index: 6, kind: input, shape index: {}]
  %s7 = inlined_call_operand.hbm [shape: f32[2,128], index: 7, kind: output, shape index: {}]
  %s8 = sld [smem:[#allocation0]]
  $region62: #{tpu_custom_call.1} parent=0
    _
  %s10 = ssub.s32 1, %s8
  %s11 = scalar_select 0, %s10, %s8
  $region1: #{tpu_custom_call.1} parent=0
    #allocation6 [shape = 'u8[8192]{0}', space=vmem, size = 0x2000, scoped, tag = 'input window, operand 0, single buffered']
    #allocation7 [shape = 's32[1]{0}', space=sflag, size = 0x4, scoped, tag = 'scoped memory for tpu_custom_call.1']
    #allocation8 [shape = 's32[1]{0}', space=sflag, size = 0x4, scoped, tag = 'scoped memory for tpu_custom_call.1']
    #allocation9 [shape = 'u8[8192]{0}', space=vmem, size = 0x2000, scoped, tag = 'input window, operand 1, single buffered']
    #allocation10 [shape = 's32[1]{0}', space=sflag, size = 0x4, scoped, tag = 'scoped memory for tpu_custom_call.1']
    #allocation11 [shape = 'u8[8192]{0}', space=vmem, size = 0x2000, scoped, tag = 'input window, operand 2, single buffered']
    #allocation12 [shape = 'u8[8192]{0}', space=vmem, size = 0x2000, scoped, tag = 'input window, operand 4, single buffered']
    #allocation13 [shape = 's32[1]{0}', space=sflag, size = 0x4, scoped, tag = 'scoped memory for tpu_custom_call.1']
    #allocation14 [shape = 'u8[1024]{0}', space=vmem, size = 0x400, scoped, tag = 'output window, operand 0, single buffered']
    %12 = vsyncpa [#allocation7], 0
    %13 = vsyncpa [#allocation10], 0
    %14 = vsyncpa [#allocation13], 0
    %15 = vsyncpa [#allocation8], 0
    // Predicated region
    $region2: #{tpu_custom_call.1} parent=1 // pred_check
      _
    $region3: #{tpu_custom_call.1} parent=1 // pred_check_branch
      %17 = sbr.rel (0) target = $region5
    $region4: #{tpu_custom_call.1} parent=1 // pred_region
      %s19 = ssub.s32 256, 256
      %20 = vsyncadd [#allocation7], %s19
      %s21 = sshll.u32 [#allocation6], 4
      %s22 = int_to_ptr.vmem [resolvable:$true] %s21
      %27 = dma.hbm_to_vmem [thread:$0]  %s0, 256, %s22, [#allocation7], 128, 128, 8
    $region5: #{tpu_custom_call.1} parent=1 // pred_fallthru
      _
    // Predicated region
    $region6: #{tpu_custom_call.1} parent=1 // pred_check
      _
    $region7: #{tpu_custom_call.1} parent=1 // pred_check_branch
      %29 = sbr.rel (0) target = $region9
    $region8: #{tpu_custom_call.1} parent=1 // pred_region
      %s31 = ssub.s32 256, 256
      %32 = vsyncadd [#allocation10], %s31
      %s33 = sshll.u32 [#allocation9], 4
      %s34 = int_to_ptr.vmem [resolvable:$true] %s33
      %39 = dma.hbm_to_vmem [thread:$0]  %s1, 256, %s34, [#allocation10], 128, 128, 8
    $region9: #{tpu_custom_call.1} parent=1 // pred_fallthru
      _
    // Predicated region
    $region10: #{tpu_custom_call.1} parent=1 // pred_check
      _
    $region11: #{tpu_custom_call.1} parent=1 // pred_check_branch
      %41 = sbr.rel (0) target = $region13
    $region12: #{tpu_custom_call.1} parent=1 // pred_region
      %s43 = ssub.s32 256, 256
      %44 = vsyncadd [#allocation10], %s43
      %s45 = sshll.u32 [#allocation11], 4
      %s46 = int_to_ptr.vmem [resolvable:$true] %s45
      %51 = dma.hbm_to_vmem [thread:$0]  %s2, 256, %s46, [#allocation10], 128, 128, 8
    $region13: #{tpu_custom_call.1} parent=1 // pred_fallthru
      _
    // Predicated region
    $region14: #{tpu_custom_call.1} parent=1 // pred_check
      _
    $region15: #{tpu_custom_call.1} parent=1 // pred_check_branch
      %53 = sbr.rel (0) target = $region17
    $region16: #{tpu_custom_call.1} parent=1 // pred_region
      _
    $region17: #{tpu_custom_call.1} parent=1 // pred_fallthru
      _
    // Predicated region
    $region18: #{tpu_custom_call.1} parent=1 // pred_check
      _
    $region19: #{tpu_custom_call.1} parent=1 // pred_check_branch
      %55 = sbr.rel (0) target = $region21
    $region20: #{tpu_custom_call.1} parent=1 // pred_region
      %s57 = ssub.s32 256, 256
      %58 = vsyncadd [#allocation13], %s57
      %s59 = sshll.u32 [#allocation12], 4
      %s60 = int_to_ptr.vmem [resolvable:$true] %s59
      %65 = dma.hbm_to_vmem [thread:$0]  %s4, 256, %s60, [#allocation13], 128, 128, 8
    $region21: #{tpu_custom_call.1} parent=1 // pred_fallthru
      _
    // Predicated region
    $region22: #{tpu_custom_call.1} parent=1 // pred_check
      _
    $region23: #{tpu_custom_call.1} parent=1 // pred_check_branch
      %67 = sbr.rel (0) target = $region25
    $region24: #{tpu_custom_call.1} parent=1 // pred_region
      _
    $region25: #{tpu_custom_call.1} parent=1 // pred_fallthru
      _
    // Predicated region
    $region26: #{tpu_custom_call.1} parent=1 // pred_check
      _
    $region27: #{tpu_custom_call.1} parent=1 // pred_check_branch
      %69 = sbr.rel (0) target = $region29
    $region28: #{tpu_custom_call.1} parent=1 // pred_region
      _
    $region29: #{tpu_custom_call.1} parent=1 // pred_fallthru
      _
    // Predicated region
    $region30: #{tpu_custom_call.1} parent=1 // pred_check
      _
    $region31: #{tpu_custom_call.1} parent=1 // pred_check_branch
      %71 = sbr.rel (0) target = $region33
    $region32: #{tpu_custom_call.1} parent=1 // pred_region
      %72 = dma.done [#allocation7], 256
    $region33: #{tpu_custom_call.1} parent=1 // pred_fallthru
      _
    // Predicated region
    $region34: #{tpu_custom_call.1} parent=1 // pred_check
      _
    $region35: #{tpu_custom_call.1} parent=1 // pred_check_branch
      %74 = sbr.rel (0) target = $region37
    $region36: #{tpu_custom_call.1} parent=1 // pred_region
      %75 = dma.done [#allocation10], 256
    $region37: #{tpu_custom_call.1} parent=1 // pred_fallthru
      _
    // Predicated region
    $region38: #{tpu_custom_call.1} parent=1 // pred_check
      _
    $region39: #{tpu_custom_call.1} parent=1 // pred_check_branch
      %77 = sbr.rel (0) target = $region41
    $region40: #{tpu_custom_call.1} parent=1 // pred_region
      %78 = dma.done [#allocation10], 256
    $region41: #{tpu_custom_call.1} parent=1 // pred_fallthru
      _
    // Predicated region
    $region42: #{tpu_custom_call.1} parent=1 // pred_check
      _
    $region43: #{tpu_custom_call.1} parent=1 // pred_check_branch
      %80 = sbr.rel (0) target = $region45
    $region44: #{tpu_custom_call.1} parent=1 // pred_region
      %81 = dma.done [#allocation13], 256
    $region45: #{tpu_custom_call.1} parent=1 // pred_fallthru
      _
    %p82 = scmp.eq.s32.totalorder 0, 0
    // Predicated region
    $region46: #{tpu_custom_call.1} parent=1 // pred_check
      %p83 = pneg %p82
    $region47: #{tpu_custom_call.1} parent=1 // pred_check_branch
      %85 = sbr.rel (%p83) target = $region49
    $region48: #{tpu_custom_call.1} parent=1 // pred_region
      %v86 = vld [vmem:[#allocation6] sm:$0xff]
      %v87 = vld [vmem:[#allocation6 + $0x8] sm:$0xff]
      %v88 = vld [vmem:[#allocation12] sm:$0xff]
      %v89 = vld [vmem:[#allocation12 + $0x8] sm:$0xff]
      %vm90 = vcmask 130048
      %v92 = vsel %vm90, %v86, 0
      %v95 = vsel %vm90, %v87, 0
      %97 = vmatprep.subr.mxu0 0.0
      %98 = vmatpush1.msra.mxu0 %v88
      %99 = vmatprep.subr.mxu0 0.0
      %100 = vmatpush1.msra.mxu0 %v89
      %101 = vmatprep.subr.mxu0 0.0
      %102 = vmatpush1.msra.mxu0 0.0
      %103 = vmatprep.subr.mxu0 0.0
      %104 = vmatpush1.msra.mxu0 0.0
      %105 = vmatprep.subr.mxu0 0.0
      %106 = vmatpush1.msra.mxu0 0.0
      %107 = vmatprep.subr.mxu0 0.0
      %108 = vmatpush1.msra.mxu0 0.0
      %109 = vmatprep.subr.mxu0 0.0
      %110 = vmatpush1.msra.mxu0 0.0
      %111 = vmatprep.subr.mxu0 0.0
      %112 = vmatpush1.msra.mxu0 0.0
      %113 = vmatprep.subr.mxu0 0.0
      %114 = vmatpush1.msra.mxu0 0.0
      %115 = vmatprep.subr.mxu0 0.0
      %116 = vmatpush1.msra.mxu0 0.0
      %117 = vmatprep.subr.mxu0 0.0
      %118 = vmatpush1.msra.mxu0 0.0
      %119 = vmatprep.subr.mxu0 0.0
      %120 = vmatpush1.msra.mxu0 0.0
      %121 = vmatprep.subr.mxu0 0.0
      %122 = vmatpush1.msra.mxu0 0.0
      %123 = vmatprep.subr.mxu0 0.0
      %124 = vmatpush1.msra.mxu0 0.0
      %125 = vmatprep.subr.mxu0 0.0
      %126 = vmatpush1.msra.mxu0 0.0
      %127 = vmatprep.subr.mxu0 0.0
      %128 = vmatpush1.msra.mxu0 0.0
      %129 = vmatprep.subr.mxu0 0.0
      %130 = vmatpush1.msra.mxu0 0.0
      %131 = vmatprep.subr.mxu0 0.0
      %132 = vmatpush1.msra.mxu0 0.0
      %133 = vmatprep.subr.mxu0 0.0
      %134 = vmatpush1.msra.mxu0 0.0
      %135 = vmatprep.subr.mxu0 0.0
      %136 = vmatpush1.msra.mxu0 0.0
      %137 = vmatprep.subr.mxu0 0.0
      %138 = vmatpush1.msra.mxu0 0.0
      %139 = vmatprep.subr.mxu0 0.0
      %140 = vmatpush1.msra.mxu0 0.0
      %141 = vmatprep.subr.mxu0 0.0
      %142 = vmatpush1.msra.mxu0 0.0
      %143 = vmatprep.subr.mxu0 0.0
      %144 = vmatpush1.msra.mxu0 0.0
      %145 = vmatprep.subr.mxu0 0.0
      %146 = vmatpush1.msra.mxu0 0.0
      %147 = vmatprep.subr.mxu0 0.0
      %148 = vmatpush1.msra.mxu0 0.0
      %149 = vmatprep.subr.mxu0 0.0
      %150 = vmatpush1.msra.mxu0 0.0
      %151 = vmatprep.subr.mxu0 0.0
      %152 = vmatpush1.msra.mxu0 0.0
      %153 = vmatprep.subr.mxu0 0.0
      %154 = vmatpush1.msra.mxu0 0.0
      %155 = vmatprep.subr.mxu0 0.0
      %156 = vmatpush1.msra.mxu0 0.0
      %157 = vmatprep.subr.mxu0 0.0
      %158 = vmatpush1.msra.mxu0 0.0
      %159 = vmatprep.subr.mxu0 0.0
      %160 = vmatpush1.msra.mxu0 0.0
      %161 = vmatprep.mubr.f32.mxu0 0.0
      %162 = vmatmul.mubr.f32.gmra.mrb[0].mxu0 %v92
      %v163 = vpop.f32.mrb[0].mxu0
      %v164 = vadd.f32 0.0, %v163
      %v165 = vpop.f32.mrb[0].mxu0
      %166 = vmatprep.mubr.f32.mxu0 0.0
      %167 = vmatmul.mubr.f32.gmra.mrb[0].mxu0 %v95
      %v168 = vpop.f32.mrb[0].mxu0
      %v169 = vadd.f32 0.0, %v168
      %v170 = vpop.f32.mrb[0].mxu0
      %171 = vdwg.mxu0
      %vm172 = vcmask 261120
      %173 = vst.msk [vmem:[#allocation2] sm:$0xff] %vm172, %v164
      %174 = vst.msk [vmem:[#allocation2 + $0x8] sm:$0xff] %vm172, %v169
      %vm175 = vcmask 7168
      %176 = vst.msk [vmem:[#allocation3] sm:$0xff] %vm175, -inf
      %177 = vst.msk [vmem:[#allocation3 + $0x8] sm:$0xff] %vm175, -inf
      %178 = vst.msk [vmem:[#allocation4] sm:$0xff] %vm175, 0.0
      %179 = vst.msk [vmem:[#allocation4 + $0x8] sm:$0xff] %vm175, 0.0
      %180 = vst.msk [vmem:[#allocation5] sm:$0xff] %vm90, 0.0
      %181 = vst.msk [vmem:[#allocation5 + $0x8] sm:$0xff] %vm90, 0.0
    $region49: #{tpu_custom_call.1} parent=1 // pred_fallthru
      _
    %v182 = vld [vmem:[#allocation9] sm:$0xff]
    %v183 = vld [vmem:[#allocation9 + $0x8] sm:$0xff]
    %v184 = vld [vmem:[%s5] sm:$0xff]
    %vm185 = vcmask 64512
    %v187 = vsel %vm185, %v182, 0
    %v190 = vsel %vm185, %v183, 0
    %192 = vmatprep.subr.mxu0 0.0
    %193 = vmatpush1.msra.mxu0 %v184
    %194 = vmatprep.subr.mxu0 0.0
    %195 = vmatpush1.msra.mxu0 0.0
    %196 = vmatprep.subr.mxu0 0.0
    %197 = vmatpush1.msra.mxu0 0.0
    %198 = vmatprep.subr.mxu0 0.0
    %199 = vmatpush1.msra.mxu0 0.0
    %200 = vmatprep.subr.mxu0 0.0
    %201 = vmatpush1.msra.mxu0 0.0
    %202 = vmatprep.subr.mxu0 0.0
    %203 = vmatpush1.msra.mxu0 0.0
    %204 = vmatprep.subr.mxu0 0.0
    %205 = vmatpush1.msra.mxu0 0.0
    %206 = vmatprep.subr.mxu0 0.0
    %207 = vmatpush1.msra.mxu0 0.0
    %208 = vmatprep.subr.mxu0 0.0
    %209 = vmatpush1.msra.mxu0 0.0
    %210 = vmatprep.subr.mxu0 0.0
    %211 = vmatpush1.msra.mxu0 0.0
    %212 = vmatprep.subr.mxu0 0.0
    %213 = vmatpush1.msra.mxu0 0.0
    %214 = vmatprep.subr.mxu0 0.0
    %215 = vmatpush1.msra.mxu0 0.0
    %216 = vmatprep.subr.mxu0 0.0
    %217 = vmatpush1.msra.mxu0 0.0
    %218 = vmatprep.subr.mxu0 0.0
    %219 = vmatpush1.msra.mxu0 0.0
    %220 = vmatprep.subr.mxu0 0.0
    %221 = vmatpush1.msra.mxu0 0.0
    %222 = vmatprep.subr.mxu0 0.0
    %223 = vmatpush1.msra.mxu0 0.0
    %224 = vmatprep.subr.mxu0 0.0
    %225 = vmatpush1.msra.mxu0 0.0
    %226 = vmatprep.subr.mxu0 0.0
    %227 = vmatpush1.msra.mxu0 0.0
    %228 = vmatprep.subr.mxu0 0.0
    %229 = vmatpush1.msra.mxu0 0.0
    %230 = vmatprep.subr.mxu0 0.0
    %231 = vmatpush1.msra.mxu0 0.0
    %232 = vmatprep.subr.mxu0 0.0
    %233 = vmatpush1.msra.mxu0 0.0
    %234 = vmatprep.subr.mxu0 0.0
    %235 = vmatpush1.msra.mxu0 0.0
    %236 = vmatprep.subr.mxu0 0.0
    %237 = vmatpush1.msra.mxu0 0.0
    %238 = vmatprep.subr.mxu0 0.0
    %239 = vmatpush1.msra.mxu0 0.0
    %240 = vmatprep.subr.mxu0 0.0
    %241 = vmatpush1.msra.mxu0 0.0
    %242 = vmatprep.subr.mxu0 0.0
    %243 = vmatpush1.msra.mxu0 0.0
    %244 = vmatprep.subr.mxu0 0.0
    %245 = vmatpush1.msra.mxu0 0.0
    %246 = vmatprep.subr.mxu0 0.0
    %247 = vmatpush1.msra.mxu0 0.0
    %248 = vmatprep.subr.mxu0 0.0
    %249 = vmatpush1.msra.mxu0 0.0
    %250 = vmatprep.subr.mxu0 0.0
    %251 = vmatpush1.msra.mxu0 0.0
    %252 = vmatprep.subr.mxu0 0.0
    %253 = vmatpush1.msra.mxu0 0.0
    %254 = vmatprep.subr.mxu0 0.0
    %255 = vmatpush1.msra.mxu0 0.0
    %256 = vmatprep.mubr.f32.mxu0 0.0
    %257 = vmatmul.mubr.f32.gmra.mrb[0].mxu0 %v187
    %v258 = vpop.f32.mrb[0].mxu0
    %v259 = vadd.f32 0.0, %v258
    %v260 = vpop.f32.mrb[0].mxu0
    %261 = vmatprep.mubr.f32.mxu0 0.0
    %262 = vmatmul.mubr.f32.gmra.mrb[0].mxu0 %v190
    %v263 = vpop.f32.mrb[0].mxu0
    %v264 = vadd.f32 0.0, %v263
    %v265 = vpop.f32.mrb[0].mxu0
    %266 = vdwg.mxu0
    %v267 = vld [vmem:[#allocation2] sm:$0xff]
    %v268 = vld [vmem:[#allocation2 + $0x8] sm:$0xff]
    %v271 = vcombine.high %v267, %v267
    %v273 = vunpack.c.l.s4 1966171168
    %v274 = vunpack.c.0.s8 %v273
    %v275 = vlaneseq
    %v276 = vshrl.u32 %v275, 7
    %v277 = vsub.s32 %v274, %v276
    %v278 = vrot.slane %v267, %v277
    %v280 = vunpack.c.l.s4 1966171168
    %v281 = vunpack.c.0.s8 %v280
    %v282 = vlaneseq
    %v283 = vshrl.u32 %v282, 7
    %v284 = vsub.s32 %v281, %v283
    %v285 = vrot.slane %v271, %v284
    %v286 = vcombine.high %v278, %v278
    %v287 = vcombine.high %v285, %v285
    %v289 = vunpack.c.l.s4 1966171168
    %v290 = vunpack.c.0.s8 %v289
    %v291 = vlaneseq
    %v292 = vshrl.u32 %v291, 7
    %v293 = vsub.s32 %v290, %v292
    %v294 = vrot.slane %v278, %v293
    %v296 = vunpack.c.l.s4 1966171168
    %v297 = vunpack.c.0.s8 %v296
    %v298 = vlaneseq
    %v299 = vshrl.u32 %v298, 7
    %v300 = vsub.s32 %v297, %v299
    %v301 = vrot.slane %v285, %v300
    %v303 = vunpack.c.l.s4 1966171168
    %v304 = vunpack.c.0.s8 %v303
    %v305 = vlaneseq
    %v306 = vshrl.u32 %v305, 7
    %v307 = vsub.s32 %v304, %v306
    %v308 = vrot.slane %v286, %v307
    %v310 = vunpack.c.l.s4 1966171168
    %v311 = vunpack.c.0.s8 %v310
    %v312 = vlaneseq
    %v313 = vshrl.u32 %v312, 7
    %v314 = vsub.s32 %v311, %v313
    %v315 = vrot.slane %v287, %v314
    %v316 = vcombine.high %v294, %v294
    %v317 = vcombine.high %v301, %v301
    %v318 = vcombine.high %v308, %v308
    %v319 = vcombine.high %v315, %v315
    %v320 = vcombine.high %v268, %v268
    %v322 = vunpack.c.l.s4 1966171168
    %v323 = vunpack.c.0.s8 %v322
    %v324 = vlaneseq
    %v325 = vshrl.u32 %v324, 7
    %v326 = vsub.s32 %v323, %v325
    %v327 = vrot.slane %v268, %v326
    %v329 = vunpack.c.l.s4 1966171168
    %v330 = vunpack.c.0.s8 %v329
    %v331 = vlaneseq
    %v332 = vshrl.u32 %v331, 7
    %v333 = vsub.s32 %v330, %v332
    %v334 = vrot.slane %v320, %v333
    %v335 = vcombine.high %v327, %v327
    %v336 = vcombine.high %v334, %v334
    %v338 = vunpack.c.l.s4 1966171168
    %v339 = vunpack.c.0.s8 %v338
    %v340 = vlaneseq
    %v341 = vshrl.u32 %v340, 7
    %v342 = vsub.s32 %v339, %v341
    %v343 = vrot.slane %v327, %v342
    %v345 = vunpack.c.l.s4 1966171168
    %v346 = vunpack.c.0.s8 %v345
    %v347 = vlaneseq
    %v348 = vshrl.u32 %v347, 7
    %v349 = vsub.s32 %v346, %v348
    %v350 = vrot.slane %v334, %v349
    %v352 = vunpack.c.l.s4 1966171168
    %v353 = vunpack.c.0.s8 %v352
    %v354 = vlaneseq
    %v355 = vshrl.u32 %v354, 7
    %v356 = vsub.s32 %v353, %v355
    %v357 = vrot.slane %v335, %v356
    %v359 = vunpack.c.l.s4 1966171168
    %v360 = vunpack.c.0.s8 %v359
    %v361 = vlaneseq
    %v362 = vshrl.u32 %v361, 7
    %v363 = vsub.s32 %v360, %v362
    %v364 = vrot.slane %v336, %v363
    %v365 = vcombine.high %v343, %v343
    %v366 = vcombine.high %v350, %v350
    %v367 = vcombine.high %v357, %v357
    %v368 = vcombine.high %v364, %v364
    %v369 = vlaneseq
    %v370 = vshrl.u32 %v369, 7
    %v371 = vsub.s32 0, %v370
    %v372 = vrot.slane %v294, %v371
    %v373 = vlaneseq
    %v374 = vshrl.u32 %v373, 7
    %v375 = vsub.s32 0, %v374
    %v376 = vrot.slane %v308, %v375
    %v377 = vlaneseq
    %v378 = vshrl.u32 %v377, 7
    %v379 = vsub.s32 0, %v378
    %v380 = vrot.slane %v316, %v379
    %v381 = vlaneseq
    %v382 = vshrl.u32 %v381, 7
    %v383 = vsub.s32 0, %v382
    %v384 = vrot.slane %v318, %v383
    %v385 = vlaneseq
    %v386 = vshrl.u32 %v385, 7
    %v387 = vsub.s32 0, %v386
    %v388 = vrot.slane %v301, %v387
    %v389 = vlaneseq
    %v390 = vshrl.u32 %v389, 7
    %v391 = vsub.s32 0, %v390
    %v392 = vrot.slane %v315, %v391
    %v393 = vlaneseq
    %v394 = vshrl.u32 %v393, 7
    %v395 = vsub.s32 0, %v394
    %v396 = vrot.slane %v317, %v395
    %v397 = vlaneseq
    %v398 = vshrl.u32 %v397, 7
    %v399 = vsub.s32 0, %v398
    %v400 = vrot.slane %v319, %v399
    %v401 = vlaneseq
    %v402 = vshrl.u32 %v401, 7
    %v403 = vsub.s32 0, %v402
    %v404 = vrot.slane %v343, %v403
    %v405 = vlaneseq
    %v406 = vshrl.u32 %v405, 7
    %v407 = vsub.s32 0, %v406
    %v408 = vrot.slane %v357, %v407
    %v409 = vlaneseq
    %v410 = vshrl.u32 %v409, 7
    %v411 = vsub.s32 0, %v410
    %v412 = vrot.slane %v365, %v411
    %v413 = vlaneseq
    %v414 = vshrl.u32 %v413, 7
    %v415 = vsub.s32 0, %v414
    %v416 = vrot.slane %v367, %v415
    %v417 = vlaneseq
    %v418 = vshrl.u32 %v417, 7
    %v419 = vsub.s32 0, %v418
    %v420 = vrot.slane %v350, %v419
    %v421 = vlaneseq
    %v422 = vshrl.u32 %v421, 7
    %v423 = vsub.s32 0, %v422
    %v424 = vrot.slane %v364, %v423
    %v425 = vlaneseq
    %v426 = vshrl.u32 %v425, 7
    %v427 = vsub.s32 0, %v426
    %v428 = vrot.slane %v366, %v427
    %v429 = vlaneseq
    %v430 = vshrl.u32 %v429, 7
    %v431 = vsub.s32 0, %v430
    %v432 = vrot.slane %v368, %v431
    %v449 = vadd.f32 %v372, %v259
    %v450 = vadd.f32 %v376, %v259
    %v451 = vadd.f32 %v380, %v259
    %v452 = vadd.f32 %v384, %v259
    %v453 = vadd.f32 %v388, %v259
    %v454 = vadd.f32 %v392, %v259
    %v455 = vadd.f32 %v396, %v259
    %v456 = vadd.f32 %v400, %v259
    %v457 = vadd.f32 %v404, %v264
    %v458 = vadd.f32 %v408, %v264
    %v459 = vadd.f32 %v412, %v264
    %v460 = vadd.f32 %v416, %v264
    %v461 = vadd.f32 %v420, %v264
    %v462 = vadd.f32 %v424, %v264
    %v463 = vadd.f32 %v428, %v264
    %v464 = vadd.f32 %v432, %v264
    %v465 = vtanh.pop %v449
    %v466 = vtanh.pop %v450
    %v467 = vtanh.pop %v451
    %v468 = vtanh.pop %v452
    %v469 = vtanh.pop %v453
    %v470 = vtanh.pop %v454
    %v471 = vtanh.pop %v455
    %v472 = vtanh.pop %v456
    %v473 = vtanh.pop %v457
    %v474 = vtanh.pop %v458
    %v475 = vtanh.pop %v459
    %v476 = vtanh.pop %v460
    %v477 = vtanh.pop %v461
    %v478 = vtanh.pop %v462
    %v479 = vtanh.pop %v463
    %v480 = vtanh.pop %v464
    %v481 = vld [vmem:[%s6] sm:$0x1]
    %v483 = vlaneseq
    %v484 = vshrl.u32 %v483, 7
    %v485 = vsub.s32 0, %v484
    %v486 = vrot.slane %v481, %v485
    %v488 = vmul.f32 %v465, %v486
    %v489 = vmul.f32 %v466, %v486
    %v490 = vmul.f32 %v467, %v486
    %v491 = vmul.f32 %v468, %v486
    %v492 = vmul.f32 %v469, %v486
    %v493 = vmul.f32 %v470, %v486
    %v494 = vmul.f32 %v471, %v486
    %v495 = vmul.f32 %v472, %v486
    %v496 = vmul.f32 %v473, %v486
    %v497 = vmul.f32 %v474, %v486
    %v498 = vmul.f32 %v475, %v486
    %v499 = vmul.f32 %v476, %v486
    %v500 = vmul.f32 %v477, %v486
    %v501 = vmul.f32 %v478, %v486
    %v502 = vmul.f32 %v479, %v486
    %v503 = vmul.f32 %v480, %v486
    %vm504 = vcmask 261120
    %v505 = vsel %vm504, %v488, 0.0
    %506 = vadd.xlane.f32.xlu0 %v505
    %v507 = vpop.xlane.xlu0 %506
    %v508 = vsel %vm504, %v489, 0.0
    %509 = vadd.xlane.f32.xlu0 %v508
    %v510 = vpop.xlane.xlu0 %509
    %v511 = vsel %vm504, %v490, 0.0
    %512 = vadd.xlane.f32.xlu0 %v511
    %v513 = vpop.xlane.xlu0 %512
    %v514 = vsel %vm504, %v491, 0.0
    %515 = vadd.xlane.f32.xlu0 %v514
    %v516 = vpop.xlane.xlu0 %515
    %v517 = vsel %vm504, %v492, 0.0
    %518 = vadd.xlane.f32.xlu0 %v517
    %v519 = vpop.xlane.xlu0 %518
    %v520 = vsel %vm504, %v493, 0.0
    %521 = vadd.xlane.f32.xlu0 %v520
    %v522 = vpop.xlane.xlu0 %521
    %v523 = vsel %vm504, %v494, 0.0
    %524 = vadd.xlane.f32.xlu0 %v523
    %v525 = vpop.xlane.xlu0 %524
    %v526 = vsel %vm504, %v495, 0.0
    %527 = vadd.xlane.f32.xlu0 %v526
    %v528 = vpop.xlane.xlu0 %527
    %v529 = vsel %vm504, %v496, 0.0
    %530 = vadd.xlane.f32.xlu0 %v529
    %v531 = vpop.xlane.xlu0 %530
    %v532 = vsel %vm504, %v497, 0.0
    %533 = vadd.xlane.f32.xlu0 %v532
    %v534 = vpop.xlane.xlu0 %533
    %v535 = vsel %vm504, %v498, 0.0
    %536 = vadd.xlane.f32.xlu0 %v535
    %v537 = vpop.xlane.xlu0 %536
    %v538 = vsel %vm504, %v499, 0.0
    %539 = vadd.xlane.f32.xlu0 %v538
    %v540 = vpop.xlane.xlu0 %539
    %v541 = vsel %vm504, %v500, 0.0
    %542 = vadd.xlane.f32.xlu0 %v541
    %v543 = vpop.xlane.xlu0 %542
    %v544 = vsel %vm504, %v501, 0.0
    %545 = vadd.xlane.f32.xlu0 %v544
    %v546 = vpop.xlane.xlu0 %545
    %v547 = vsel %vm504, %v502, 0.0
    %548 = vadd.xlane.f32.xlu0 %v547
    %v549 = vpop.xlane.xlu0 %548
    %v550 = vsel %vm504, %v503, 0.0
    %551 = vadd.xlane.f32.xlu0 %v550
    %v552 = vpop.xlane.xlu0 %551
    %v553 = vld [vmem:[%s3] sm:$0x3]
    %v556 = vunpack.c.l.s4 1966171168
    %v557 = vunpack.c.0.s8 %v556
    %v558 = vlaneseq
    %v559 = vshrl.u32 %v558, 7
    %v560 = vsub.s32 %v557, %v559
    %v561 = vrot.slane %v553, %v560
    %v562 = vcombine.high %v561, %v561
    %v564 = vunpack.c.l.s4 1966171168
    %v565 = vunpack.c.0.s8 %v564
    %v566 = vlaneseq
    %v567 = vshrl.u32 %v566, 7
    %v568 = vsub.s32 %v565, %v567
    %v569 = vrot.slane %v561, %v568
    %v571 = vunpack.c.l.s4 1966171168
    %v572 = vunpack.c.0.s8 %v571
    %v573 = vlaneseq
    %v574 = vshrl.u32 %v573, 7
    %v575 = vsub.s32 %v572, %v574
    %v576 = vrot.slane %v562, %v575
    %vm579 = vcmp.gt.f32.partialorder %v569, 0.5
    %vm580 = vcmp.gt.f32.partialorder %v576, 0.5
    %v581 = vsel %vm579, 1, 0
    %v582 = vsel %vm580, 1, 0
    %v583 = vlaneseq
    %v584 = vshrl.u32 %v583, 7
    %v585 = vsub.s32 0, %v584
    %v586 = vrot.slane %v581, %v585
    %v587 = vlaneseq
    %v588 = vshrl.u32 %v587, 7
    %v589 = vsub.s32 0, %v588
    %v590 = vrot.slane %v582, %v589
    %vm591 = vcmp.eq.s32.totalorder %v586, 1
    %vm592 = vcmp.eq.s32.totalorder %v590, 1
    %v609 = vlaneseq
    %v610 = vand.u32 %v609, 127
    %v611 = vlaneseq
    %v612 = vshrl.u32 %v611, 7
    %v613 = vsub.s32 %v610, %v612
    %v614 = vrot.slane %v507, %v613
    %v615 = vlaneseq
    %v616 = vshrl.u32 %v615, 7
    %v617 = vsub.s32 %v610, %v616
    %v618 = vrot.slane %v510, %v617
    %v619 = vlaneseq
    %v620 = vshrl.u32 %v619, 7
    %v621 = vsub.s32 %v610, %v620
    %v622 = vrot.slane %v513, %v621
    %v623 = vlaneseq
    %v624 = vshrl.u32 %v623, 7
    %v625 = vsub.s32 %v610, %v624
    %v626 = vrot.slane %v516, %v625
    %v627 = vlaneseq
    %v628 = vshrl.u32 %v627, 7
    %v629 = vsub.s32 %v610, %v628
    %v630 = vrot.slane %v519, %v629
    %v631 = vlaneseq
    %v632 = vshrl.u32 %v631, 7
    %v633 = vsub.s32 %v610, %v632
    %v634 = vrot.slane %v522, %v633
    %v635 = vlaneseq
    %v636 = vshrl.u32 %v635, 7
    %v637 = vsub.s32 %v610, %v636
    %v638 = vrot.slane %v525, %v637
    %v639 = vlaneseq
    %v640 = vshrl.u32 %v639, 7
    %v641 = vsub.s32 %v610, %v640
    %v642 = vrot.slane %v528, %v641
    %v643 = vlaneseq
    %v644 = vshrl.u32 %v643, 7
    %v645 = vsub.s32 %v610, %v644
    %v646 = vrot.slane %v531, %v645
    %v647 = vlaneseq
    %v648 = vshrl.u32 %v647, 7
    %v649 = vsub.s32 %v610, %v648
    %v650 = vrot.slane %v534, %v649
    %v651 = vlaneseq
    %v652 = vshrl.u32 %v651, 7
    %v653 = vsub.s32 %v610, %v652
    %v654 = vrot.slane %v537, %v653
    %v655 = vlaneseq
    %v656 = vshrl.u32 %v655, 7
    %v657 = vsub.s32 %v610, %v656
    %v658 = vrot.slane %v540, %v657
    %v659 = vlaneseq
    %v660 = vshrl.u32 %v659, 7
    %v661 = vsub.s32 %v610, %v660
    %v662 = vrot.slane %v543, %v661
    %v663 = vlaneseq
    %v664 = vshrl.u32 %v663, 7
    %v665 = vsub.s32 %v610, %v664
    %v666 = vrot.slane %v546, %v665
    %v667 = vlaneseq
    %v668 = vshrl.u32 %v667, 7
    %v669 = vsub.s32 %v610, %v668
    %v670 = vrot.slane %v549, %v669
    %v671 = vlaneseq
    %v672 = vshrl.u32 %v671, 7
    %v673 = vsub.s32 %v610, %v672
    %v674 = vrot.slane %v552, %v673
    %vm675 = vcmask 1041409
    %v676 = vsel %vm675, %v618, %v614
    %vm677 = vcmask 1042434
    %v678 = vsel %vm677, %v622, %v676
    %vm679 = vcmask 1043459
    %v680 = vsel %vm679, %v626, %v678
    %vm681 = vcmask 1044484
    %v682 = vsel %vm681, %v630, %v680
    %vm683 = vcmask 1045509
    %v684 = vsel %vm683, %v634, %v682
    %vm685 = vcmask 1046534
    %v686 = vsel %vm685, %v638, %v684
    %vm687 = vcmask 1047559
    %v688 = vsel %vm687, %v642, %v686
    %v689 = vsel %vm675, %v650, %v646
    %v690 = vsel %vm677, %v654, %v689
    %v691 = vsel %vm679, %v658, %v690
    %v692 = vsel %vm681, %v662, %v691
    %v693 = vsel %vm683, %v666, %v692
    %v694 = vsel %vm685, %v670, %v693
    %v695 = vsel %vm687, %v674, %v694
    %v698 = vsel %vm591, %v688, -1000000.0
    %v699 = vsel %vm592, %v695, -1000000.0
    %v700 = vld [vmem:[#allocation3] sm:$0xff]
    %v701 = vld [vmem:[#allocation3 + $0x8] sm:$0xff]
    %v702 = vsel %vm185, %v698, -inf
    %703 = vmax.xlane.f32.xlu0 %v702
    %v704 = vpop.xlane.xlu0 %703
    %v705 = vsel %vm185, %v699, -inf
    %706 = vmax.xlane.f32.xlu0 %v705
    %v707 = vpop.xlane.xlu0 %706
    %v708 = vmax.f32 %v700, %v704
    %v709 = vmax.f32 %v701, %v707
    %v710 = vsub.f32 %v700, %v708
    %v711 = vsub.f32 %v701, %v709
    %v712 = vmul.f32 %v710, 1.442695
    %v713 = vpow.pop %v712
    %v714 = vmul.f32 %v711, 1.442695
    %v715 = vpow.pop %v714
    %717 = vset.pattern.permute.xlu0 0
    %718 = vperm.xlu0 %717, %v708
    %v719 = vpop.permute.xlu0 %718
    %722 = vset.pattern.permute.xlu0 0
    %723 = vperm.xlu0 %722, %v709
    %v724 = vpop.permute.xlu0 %723
    %v726 = vsub.f32 %v698, %v719
    %v727 = vsub.f32 %v699, %v724
    %v728 = vmul.f32 %v726, 1.442695
    %v729 = vpow.pop %v728
    %v730 = vmul.f32 %v727, 1.442695
    %v731 = vpow.pop %v730
    %v732 = vld [vmem:[#allocation4] sm:$0xff]
    %v733 = vld [vmem:[#allocation4 + $0x8] sm:$0xff]
    %v734 = vmul.f32 %v713, %v732
    %v735 = vmul.f32 %v715, %v733
    %v736 = vsel %vm185, %v729, 0.0
    %737 = vadd.xlane.f32.xlu0 %v736
    %v738 = vpop.xlane.xlu0 %737
    %v739 = vsel %vm185, %v731, 0.0
    %740 = vadd.xlane.f32.xlu0 %v739
    %v741 = vpop.xlane.xlu0 %740
    %v742 = vadd.f32 %v734, %v738
    %v743 = vadd.f32 %v735, %v741
    %vm744 = vcmask 7168
    %745 = vst.msk [vmem:[#allocation4] sm:$0xff] %vm744, %v742
    %746 = vst.msk [vmem:[#allocation4 + $0x8] sm:$0xff] %vm744, %v743
    %v747 = vld [vmem:[#allocation5] sm:$0xff]
    %v748 = vld [vmem:[#allocation5 + $0x8] sm:$0xff]
    %750 = vset.pattern.permute.xlu0 0
    %751 = vperm.xlu0 %750, %v713
    %v752 = vpop.permute.xlu0 %751
    %755 = vset.pattern.permute.xlu0 0
    %756 = vperm.xlu0 %755, %v715
    %v757 = vpop.permute.xlu0 %756
    %v759 = vmul.f32 %v752, %v747
    %v760 = vmul.f32 %v757, %v748
    %v761 = vld [vmem:[#allocation11] sm:$0xff]
    %v762 = vld [vmem:[#allocation11 + $0x8] sm:$0xff]
    %v764 = vsel %vm185, %v729, 0
    %766 = vmatprep.subr.mxu0 0.0
    %767 = vmatpush1.msra.mxu0 %v761
    %768 = vmatprep.subr.mxu0 0.0
    %769 = vmatpush1.msra.mxu0 0.0
    %770 = vmatprep.subr.mxu0 0.0
    %771 = vmatpush1.msra.mxu0 0.0
    %772 = vmatprep.subr.mxu0 0.0
    %773 = vmatpush1.msra.mxu0 0.0
    %774 = vmatprep.subr.mxu0 0.0
    %775 = vmatpush1.msra.mxu0 0.0
    %776 = vmatprep.subr.mxu0 0.0
    %777 = vmatpush1.msra.mxu0 0.0
    %778 = vmatprep.subr.mxu0 0.0
    %779 = vmatpush1.msra.mxu0 0.0
    %780 = vmatprep.subr.mxu0 0.0
    %781 = vmatpush1.msra.mxu0 0.0
    %782 = vmatprep.subr.mxu0 0.0
    %783 = vmatpush1.msra.mxu0 0.0
    %784 = vmatprep.subr.mxu0 0.0
    %785 = vmatpush1.msra.mxu0 0.0
    %786 = vmatprep.subr.mxu0 0.0
    %787 = vmatpush1.msra.mxu0 0.0
    %788 = vmatprep.subr.mxu0 0.0
    %789 = vmatpush1.msra.mxu0 0.0
    %790 = vmatprep.subr.mxu0 0.0
    %791 = vmatpush1.msra.mxu0 0.0
    %792 = vmatprep.subr.mxu0 0.0
    %793 = vmatpush1.msra.mxu0 0.0
    %794 = vmatprep.subr.mxu0 0.0
    %795 = vmatpush1.msra.mxu0 0.0
    %796 = vmatprep.subr.mxu0 0.0
    %797 = vmatpush1.msra.mxu0 0.0
    %798 = vmatprep.subr.mxu0 0.0
    %799 = vmatpush1.msra.mxu0 0.0
    %800 = vmatprep.subr.mxu0 0.0
    %801 = vmatpush1.msra.mxu0 0.0
    %802 = vmatprep.subr.mxu0 0.0
    %803 = vmatpush1.msra.mxu0 0.0
    %804 = vmatprep.subr.mxu0 0.0
    %805 = vmatpush1.msra.mxu0 0.0
    %806 = vmatprep.subr.mxu0 0.0
    %807 = vmatpush1.msra.mxu0 0.0
    %808 = vmatprep.subr.mxu0 0.0
    %809 = vmatpush1.msra.mxu0 0.0
    %810 = vmatprep.subr.mxu0 0.0
    %811 = vmatpush1.msra.mxu0 0.0
    %812 = vmatprep.subr.mxu0 0.0
    %813 = vmatpush1.msra.mxu0 0.0
    %814 = vmatprep.subr.mxu0 0.0
    %815 = vmatpush1.msra.mxu0 0.0
    %816 = vmatprep.subr.mxu0 0.0
    %817 = vmatpush1.msra.mxu0 0.0
    %818 = vmatprep.subr.mxu0 0.0
    %819 = vmatpush1.msra.mxu0 0.0
    %820 = vmatprep.subr.mxu0 0.0
    %821 = vmatpush1.msra.mxu0 0.0
    %822 = vmatprep.subr.mxu0 0.0
    %823 = vmatpush1.msra.mxu0 0.0
    %824 = vmatprep.subr.mxu0 0.0
    %825 = vmatpush1.msra.mxu0 0.0
    %826 = vmatprep.subr.mxu0 0.0
    %827 = vmatpush1.msra.mxu0 0.0
    %828 = vmatprep.subr.mxu0 0.0
    %829 = vmatpush1.msra.mxu0 0.0
    %830 = vmatprep.mubr.f32.mxu0 0.0
    %831 = vmatmul.mubr.f32.gmra.mrb[0].mxu0 %v764
    %v832 = vpop.f32.mrb[0].mxu0
    %v833 = vadd.f32 0.0, %v832
    %v834 = vpop.f32.mrb[0].mxu0
    %835 = vdwg.mxu0
    %v837 = vsel %vm185, %v731, 0
    %839 = vmatprep.subr.mxu0 0.0
    %840 = vmatpush1.msra.mxu0 %v762
    %841 = vmatprep.subr.mxu0 0.0
    %842 = vmatpush1.msra.mxu0 0.0
    %843 = vmatprep.subr.mxu0 0.0
    %844 = vmatpush1.msra.mxu0 0.0
    %845 = vmatprep.subr.mxu0 0.0
    %846 = vmatpush1.msra.mxu0 0.0
    %847 = vmatprep.subr.mxu0 0.0
    %848 = vmatpush1.msra.mxu0 0.0
    %849 = vmatprep.subr.mxu0 0.0
    %850 = vmatpush1.msra.mxu0 0.0
    %851 = vmatprep.subr.mxu0 0.0
    %852 = vmatpush1.msra.mxu0 0.0
    %853 = vmatprep.subr.mxu0 0.0
    %854 = vmatpush1.msra.mxu0 0.0
    %855 = vmatprep.subr.mxu0 0.0
    %856 = vmatpush1.msra.mxu0 0.0
    %857 = vmatprep.subr.mxu0 0.0
    %858 = vmatpush1.msra.mxu0 0.0
    %859 = vmatprep.subr.mxu0 0.0
    %860 = vmatpush1.msra.mxu0 0.0
    %861 = vmatprep.subr.mxu0 0.0
    %862 = vmatpush1.msra.mxu0 0.0
    %863 = vmatprep.subr.mxu0 0.0
    %864 = vmatpush1.msra.mxu0 0.0
    %865 = vmatprep.subr.mxu0 0.0
    %866 = vmatpush1.msra.mxu0 0.0
    %867 = vmatprep.subr.mxu0 0.0
    %868 = vmatpush1.msra.mxu0 0.0
    %869 = vmatprep.subr.mxu0 0.0
    %870 = vmatpush1.msra.mxu0 0.0
    %871 = vmatprep.subr.mxu0 0.0
    %872 = vmatpush1.msra.mxu0 0.0
    %873 = vmatprep.subr.mxu0 0.0
    %874 = vmatpush1.msra.mxu0 0.0
    %875 = vmatprep.subr.mxu0 0.0
    %876 = vmatpush1.msra.mxu0 0.0
    %877 = vmatprep.subr.mxu0 0.0
    %878 = vmatpush1.msra.mxu0 0.0
    %879 = vmatprep.subr.mxu0 0.0
    %880 = vmatpush1.msra.mxu0 0.0
    %881 = vmatprep.subr.mxu0 0.0
    %882 = vmatpush1.msra.mxu0 0.0
    %883 = vmatprep.subr.mxu0 0.0
    %884 = vmatpush1.msra.mxu0 0.0
    %885 = vmatprep.subr.mxu0 0.0
    %886 = vmatpush1.msra.mxu0 0.0
    %887 = vmatprep.subr.mxu0 0.0
    %888 = vmatpush1.msra.mxu0 0.0
    %889 = vmatprep.subr.mxu0 0.0
    %890 = vmatpush1.msra.mxu0 0.0
    %891 = vmatprep.subr.mxu0 0.0
    %892 = vmatpush1.msra.mxu0 0.0
    %893 = vmatprep.subr.mxu0 0.0
    %894 = vmatpush1.msra.mxu0 0.0
    %895 = vmatprep.subr.mxu0 0.0
    %896 = vmatpush1.msra.mxu0 0.0
    %897 = vmatprep.subr.mxu0 0.0
    %898 = vmatpush1.msra.mxu0 0.0
    %899 = vmatprep.subr.mxu0 0.0
    %900 = vmatpush1.msra.mxu0 0.0
    %901 = vmatprep.subr.mxu0 0.0
    %902 = vmatpush1.msra.mxu0 0.0
    %903 = vmatprep.mubr.f32.mxu0 0.0
    %904 = vmatmul.mubr.f32.gmra.mrb[0].mxu0 %v837
    %v905 = vpop.f32.mrb[0].mxu0
    %v906 = vadd.f32 0.0, %v905
    %v907 = vpop.f32.mrb[0].mxu0
    %908 = vdwg.mxu0
    %v909 = vadd.f32 %v759, %v833
    %v910 = vadd.f32 %v760, %v906
    %vm911 = vcmask 130048
    %912 = vst.msk [vmem:[#allocation5] sm:$0xff] %vm911, %v909
    %913 = vst.msk [vmem:[#allocation5 + $0x8] sm:$0xff] %vm911, %v910
    %914 = vst.msk [vmem:[#allocation3] sm:$0xff] %vm744, %v708
    %915 = vst.msk [vmem:[#allocation3 + $0x8] sm:$0xff] %vm744, %v709
    // Predicated region
    $region50: #{tpu_custom_call.1} parent=1 // pred_check
      %p916 = pneg %p82
    $region51: #{tpu_custom_call.1} parent=1 // pred_check_branch
      %918 = sbr.rel (%p916) target = $region53
    $region52: #{tpu_custom_call.1} parent=1 // pred_region
      %v919 = vld [vmem:[#allocation4] sm:$0xff]
      %v920 = vld [vmem:[#allocation4 + $0x8] sm:$0xff]
      %v921 = vrcp.pop %v919
      %v922 = vrcp.pop %v920
      %v923 = vmul.f32 %v919, %v921
      %v924 = vmul.f32 %v920, %v922
      %v925 = vsub.f32 2.0, %v923
      %v926 = vsub.f32 2.0, %v924
      %v927 = vmul.f32 %v921, %v925
      %v928 = vmul.f32 %v922, %v926
      %v929 = vld [vmem:[#allocation5] sm:$0xff]
      %v930 = vld [vmem:[#allocation5 + $0x8] sm:$0xff]
      %932 = vset.pattern.permute.xlu0 0
      %933 = vperm.xlu0 %932, %v927
      %v934 = vpop.permute.xlu0 %933
      %937 = vset.pattern.permute.xlu0 0
      %938 = vperm.xlu0 %937, %v928
      %v939 = vpop.permute.xlu0 %938
      %v941 = vmul.f32 %v929, %v934
      %v942 = vmul.f32 %v930, %v939
      %v943 = vcombine.high %v941, 0.0
      %v945 = vunpack.c.l.s4 1983009808
      %v946 = vunpack.c.0.s8 %v945
      %v947 = vlaneseq
      %v948 = vshrl.u32 %v947, 7
      %v949 = vsub.s32 %v946, %v948
      %v950 = vrot.slane %v941, %v949
      %v952 = vunpack.c.l.s4 1983009808
      %v953 = vunpack.c.0.s8 %v952
      %v954 = vlaneseq
      %v955 = vshrl.u32 %v954, 7
      %v956 = vsub.s32 %v953, %v955
      %v957 = vrot.slane %v943, %v956
      %v958 = vcombine.high %v942, 0.0
      %v960 = vunpack.c.l.s4 1983009808
      %v961 = vunpack.c.0.s8 %v960
      %v962 = vlaneseq
      %v963 = vshrl.u32 %v962, 7
      %v964 = vsub.s32 %v961, %v963
      %v965 = vrot.slane %v942, %v964
      %v967 = vunpack.c.l.s4 1983009808
      %v968 = vunpack.c.0.s8 %v967
      %v969 = vlaneseq
      %v970 = vshrl.u32 %v969, 7
      %v971 = vsub.s32 %v968, %v970
      %v972 = vrot.slane %v958, %v971
      %v973 = vcombine.low %v950, %v965
      %v974 = vcombine.high %v950, %v965
      %v976 = vunpack.c.l.s4 1934713408
      %v977 = vunpack.c.0.s8 %v976
      %v978 = vlaneseq
      %v979 = vshrl.u32 %v978, 7
      %v980 = vsub.s32 %v977, %v979
      %v981 = vrot.slane %v973, %v980
      %v983 = vunpack.c.l.s4 1934713408
      %v984 = vunpack.c.0.s8 %v983
      %v985 = vlaneseq
      %v986 = vshrl.u32 %v985, 7
      %v987 = vsub.s32 %v984, %v986
      %v988 = vrot.slane %v974, %v987
      %v989 = vcombine.low %v957, %v972
      %v990 = vcombine.high %v957, %v972
      %v992 = vunpack.c.l.s4 1934713408
      %v993 = vunpack.c.0.s8 %v992
      %v994 = vlaneseq
      %v995 = vshrl.u32 %v994, 7
      %v996 = vsub.s32 %v993, %v995
      %v997 = vrot.slane %v989, %v996
      %v999 = vunpack.c.l.s4 1934713408
      %v1000 = vunpack.c.0.s8 %v999
      %v1001 = vlaneseq
      %v1002 = vshrl.u32 %v1001, 7
      %v1003 = vsub.s32 %v1000, %v1002
      %v1004 = vrot.slane %v990, %v1003
      %v1005 = vcombine.high %v981, 0.0
      %v1006 = vcombine.high %v988, 0.0
      %v1007 = vcombine.high %v997, 0.0
      %v1008 = vcombine.high %v1004, 0.0
      %1010 = vrot.lane.b32.xlu0 %v1005, 16
      %v1011 = vpop.permute.xlu0 %1010
      %1014 = vrot.lane.b32.xlu0 %v988, 32
      %v1015 = vpop.permute.xlu0 %1014
      %1018 = vrot.lane.b32.xlu0 %v1006, 48
      %v1019 = vpop.permute.xlu0 %1018
      %1022 = vrot.lane.b32.xlu0 %v997, 64
      %v1023 = vpop.permute.xlu0 %1022
      %1026 = vrot.lane.b32.xlu0 %v1007, 80
      %v1027 = vpop.permute.xlu0 %1026
      %1030 = vrot.lane.b32.xlu0 %v1004, 96
      %v1031 = vpop.permute.xlu0 %1030
      %1034 = vrot.lane.b32.xlu0 %v1008, 112
      %v1035 = vpop.permute.xlu0 %1034
      %v1037 = vsel %vm911, %v981, %v1011
      %v1038 = vsel %vm504, %v1037, %v1015
      %vm1039 = vcmask 392192
      %v1040 = vsel %vm1039, %v1038, %v1019
      %vm1041 = vcmask 523264
      %v1042 = vsel %vm1041, %v1040, %v1023
      %vm1043 = vcmask 654336
      %v1044 = vsel %vm1043, %v1042, %v1027
      %vm1045 = vcmask 785408
      %v1046 = vsel %vm1045, %v1044, %v1031
      %vm1047 = vcmask 916480
      %v1048 = vsel %vm1047, %v1046, %v1035
      %1049 = vst [vmem:[#allocation14] sm:$0x3] %v1048
    $region53: #{tpu_custom_call.1} parent=1 // pred_fallthru
      _
    // Predicated region
    $region54: #{tpu_custom_call.1} parent=1 // pred_check
      _
    $region55: #{tpu_custom_call.1} parent=1 // pred_check_branch
      %1051 = sbr.rel (0) target = $region57
    $region56: #{tpu_custom_call.1} parent=1 // pred_region
      %s1053 = ssub.s32 32, 32
      %1054 = vsyncadd [#allocation8], %s1053
      %s1056 = sshll.u32 [#allocation14], 4
      %s1057 = int_to_ptr.vmem [resolvable:$true] %s1056
      %1059 = dma.vmem_to_hbm [thread:$0]  %s1057, 32, %s7, [#allocation8]
    $region57: #{tpu_custom_call.1} parent=1 // pred_fallthru
      _
    // Predicated region
    $region58: #{tpu_custom_call.1} parent=1 // pred_check
      _
    $region59: #{tpu_custom_call.1} parent=1 // pred_check_branch
      %1061 = sbr.rel (0) target = $region61
    $region60: #{tpu_custom_call.1} parent=1 // pred_region
      %1062 = dma.done [#allocation8], 32
    $region61: #{tpu_custom_call.1} parent=1 // pred_fallthru
      _
    %1063 = vsyncpa [#allocation7], 1
    %1064 = vsyncpa [#allocation10], 1
    %1065 = vsyncpa [#allocation13], 1
    %1066 = vsyncpa [#allocation8], 1

</llo_original>
